<compile_context>
chip_gen: v6e
topology: v6e:2x2x1
jax: 0.10.0
libtpu: 0.0.40
codegen_flags: <defaults>
</compile_context>

<pallas_src>
import math
from functools import partial

import jax
import jax.numpy as jnp
from jax.experimental import pallas as pl
from jax.experimental.pallas import tpu as pltpu


# --------------------------------------------------------------------------- #
# Kernel
# --------------------------------------------------------------------------- #
def _grouped_patch_gen_kernel(noise_ref, w1_ref, b1_ref, w2_ref, b2_ref, out_ref):
    """One (group, batch-tile) step: fused two-layer MLP for `gs` generators.

    noise_ref: (1, bm, gs*nd)    matmul dtype (bf16 or f32)
    w1_ref:    (1, gs*nd, gs*H)  block-diagonal within the group
    b1_ref:    (1, 1, gs*H)      f32
    w2_ref:    (1, gs*H, gs*pp)  block-diagonal within the group
    b2_ref:    (1, 1, gs*pp)     f32
    out_ref:   (bm, gs*pp)       lane-dense output slice
    """
    x = noise_ref[0]
    h = jnp.dot(x, w1_ref[0], preferred_element_type=jnp.float32)        # MXU
    h = jnp.maximum(h + b1_ref[0], 0.0)                                  # f32 bias + ReLU (VPU)
    p = jnp.dot(h.astype(w2_ref.dtype), w2_ref[0],
                preferred_element_type=jnp.float32)                      # MXU
    out_ref[...] = jnp.tanh(p + b2_ref[0]).astype(out_ref.dtype)         # tanh (EUP), lane-dense vst


# --------------------------------------------------------------------------- #
# One-time parameter preparation (hoisted out of the per-call forward path)
# --------------------------------------------------------------------------- #
def _choose_group_size(n_gen, pp):
    """Smallest group size dividing n_gen with gs*pp a multiple of 128."""
    for gs in range(1, n_gen + 1):
        if n_gen % gs == 0 and (gs * pp) % 128 == 0:
            return gs
    # TODO(synk): if n_gen*pp itself is not a multiple of 128, the single output
    # block equals the full feature dim and stores may be masked; pad pp then.
    return n_gen


def _group_block_diag(w, gs):
    """(G, a, b) per-generator weights -> (G//gs, gs*a, gs*b): block-diagonal
    fusion within each group (exact, since the inter-matmul activation is
    elementwise)."""
    g, a, b = w.shape
    ng = g // gs
    wg = w.reshape(ng, gs, a, b)
    eye = jnp.eye(gs, dtype=w.dtype)
    blk = jnp.einsum("nqab,qh->nqahb", wg, eye)       # zero off-diagonal blocks
    return blk.reshape(ng, gs * a, gs * b)


def prepare_patch_generator_params(w1, b1, w2, b2, patch_size,
                                   matmul_dtype=jnp.bfloat16):
    """Build the grouped, fused weight layout ONCE (call when weights change).

    w1: (G, nd, H); b1: (G, 1, H); w2: (G, H, pp); b2: (G, 1, pp).
    Returns (w1_bd, b1_f, w2_bd, b2_f) consumed by the forward below.
    """
    n_gen, noise_dim, hidden = w1.shape
    pp = patch_size * patch_size
    assert w2.shape == (n_gen, hidden, pp)
    gs = _choose_group_size(n_gen, pp)
    ng = n_gen // gs
    w1_bd = _group_block_diag(w1, gs).astype(matmul_dtype)       # (ng, gs*nd, gs*H)
    w2_bd = _group_block_diag(w2, gs).astype(matmul_dtype)       # (ng, gs*H, gs*pp)
    b1_f = b1.reshape(ng, 1, gs * hidden).astype(jnp.float32)    # generator-major concat
    b2_f = b2.reshape(ng, 1, gs * pp).astype(jnp.float32)
    return w1_bd, b1_f, w2_bd, b2_f


# --------------------------------------------------------------------------- #
# Forward
# --------------------------------------------------------------------------- #
def _choose_batch_tile(batch):
    """Batch tile: multiple of 8, <= 512, and >= 2 tiles whenever batch > 8 so
    the grid can shard across both TensorCores on v7x."""
    if batch <= 8:
        return batch
    bm = min(512, pl.cdiv(batch, 2))
    return max(8, pl.cdiv(bm, 8) * 8)


@partial(jax.jit, static_argnames=("patch_size", "out_dtype"))
def patch_classical_generator_forward(noise, w1_bd, b1_f, w2_bd, b2_f,
                                      patch_size, out_dtype=jnp.float32):
    """noise: (n_gen, B, noise_dim) — the per-generator randn draws.
    (w1_bd, b1_f, w2_bd, b2_f): output of prepare_patch_generator_params.
    Returns (B, 1, n_side*ps, n_side*ps) in NCHW, matching the torch module."""
    n_gen, batch, noise_dim = noise.shape
    pp = patch_size * patch_size
    ng = w1_bd.shape[0]
    gs = n_gen // ng
    gs_nd = gs * noise_dim
    gs_h = w1_bd.shape[2]
    gs_pp = gs * pp
    assert w1_bd.shape == (ng, gs_nd, gs_h)
    assert w2_bd.shape == (ng, gs_h, gs_pp)
    n_side = int(math.sqrt(n_gen))
    assert n_side * n_side == n_gen, "n_generators must be a perfect square"

    # Grouped, generator-major noise layout: (ng, B, gs*nd), matmul dtype.
    noise_f = jnp.transpose(noise.reshape(ng, gs, batch, noise_dim), (0, 2, 1, 3))
    noise_f = noise_f.reshape(ng, batch, gs_nd).astype(w1_bd.dtype)

    # Batch tiling (+ zero padding for ragged batches).
    bm = _choose_batch_tile(batch)
    nb = pl.cdiv(batch, bm)
    batch_p = bm * nb
    if batch_p != batch:
        noise_f = jnp.pad(noise_f, ((0, 0), (0, batch_p - batch), (0, 0)))

    # VMEM budget: double-buffered blocks + f32 intermediates, with headroom.
    mm_b = w1_bd.dtype.itemsize
    out_b = jnp.dtype(out_dtype).itemsize
    blk_bytes = (2 * bm * gs_nd * mm_b                        # noise   (x2 buffers)
                 + 2 * bm * gs_pp * out_b                     # out     (x2 buffers)
                 + 2 * (gs_nd * gs_h + gs_h * gs_pp) * mm_b   # weights (x2 buffers)
                 + 2 * (gs_h + gs_pp) * 4                     # biases  (x2 buffers)
                 + 4 * bm * (gs_h + gs_pp))                   # f32 intermediates
    vmem_limit = int(min(max(2 * blk_bytes, 16 << 20), 64 << 20))

    patches = pl.pallas_call(
        _grouped_patch_gen_kernel,
        out_shape=jax.ShapeDtypeStruct((batch_p, n_gen * pp), out_dtype),
        grid_spec=pltpu.PrefetchScalarGridSpec(
            num_scalar_prefetch=0,
            grid=(ng, nb),          # group OUTER (weights stay resident), batch INNER
            in_specs=[
                pl.BlockSpec((1, bm, gs_nd), lambda g, i: (g, i, 0)),
                pl.BlockSpec((1, gs_nd, gs_h), lambda g, i: (g, 0, 0)),
                pl.BlockSpec((1, 1, gs_h), lambda g, i: (g, 0, 0)),
                pl.BlockSpec((1, gs_h, gs_pp), lambda g, i: (g, 0, 0)),
                pl.BlockSpec((1, 1, gs_pp), lambda g, i: (g, 0, 0)),
            ],
            out_specs=pl.BlockSpec((bm, gs_pp), lambda g, i: (i, g)),
        ),
        compiler_params=pltpu.CompilerParams(
            dimension_semantics=("parallel", "parallel"),
            vmem_limit_bytes=vmem_limit),
    )(noise_f, w1_bd, b1_f, w2_bd, b2_f)

    # torch: cat(dim=1) -> (B, G, ps, ps); .view -> (B, 1, n_side*ps, n_side*ps).
    # Our (B, G*pp) slab is already in that flat order, so this is a free view.
    return patches[:batch].reshape(batch, 1, n_side * patch_size, n_side * patch_size)


# --------------------------------------------------------------------------- #
# Demo / correctness check
# --------------------------------------------------------------------------- #
if __name__ == "__main__":
    # Small, self-consistent shapes (n_generators must be a perfect square).
    n_generators = 4
    patch_size = 8
    noise_dim = 16
    hidden = 128          # fixed by the module: nn.Linear(noise_dim, 128)
    batch = 16            # >8 -> two batch tiles (exercises the megacore split)

    key = jax.random.PRNGKey(0)
    k_x, k_noise, k_w1, k_b1, k_w2, k_b2 = jax.random.split(key, 6)

    # x: only its batch dimension is consumed by the torch forward.
    x = jax.random.normal(k_x, (batch, 1, patch_size, patch_size), jnp.float32)

    # Per-generator noise (torch draws it inside forward; here drawn
    # deterministically in the wrapper and fed to the kernel).
    noise = jax.random.normal(k_noise, (n_generators, batch, noise_dim), jnp.float32)

    # Deterministic synthetic parameters (shapes from the module's __init__).
    w1 = jax.random.normal(k_w1, (n_generators, noise_dim, hidden), jnp.float32) / math.sqrt(noise_dim)
    b1 = jax.random.normal(k_b1, (n_generators, 1, hidden), jnp.float32) * 0.01
    w2 = jax.random.normal(k_w2, (n_generators, hidden, patch_size * patch_size), jnp.float32) / math.sqrt(hidden)
    b2 = jax.random.normal(k_b2, (n_generators, 1, patch_size * patch_size), jnp.float32) * 0.01

    # Pure-JAX per-generator reference (confirms the grouped fusion is exact).
    n_side = int(math.sqrt(n_generators))
    ref_patches = [jnp.tanh(jnp.maximum(noise[g] @ w1[g] + b1[g], 0.0) @ w2[g] + b2[g])
                   for g in range(n_generators)]
    ref = jnp.stack(ref_patches, axis=1).reshape(
        batch, 1, n_side * patch_size, n_side * patch_size)

    # 1) Exact path: f32 matmuls, f32 output.
    params_f32 = prepare_patch_generator_params(w1, b1, w2, b2, patch_size,
                                                matmul_dtype=jnp.float32)
    out_f32 = patch_classical_generator_forward(noise, *params_f32,
                                                patch_size=patch_size,
                                                out_dtype=jnp.float32)
    out_f32 = jax.block_until_ready(out_f32)
    assert out_f32.shape == (batch, 1, n_side * patch_size, n_side * patch_size), out_f32.shape
    assert bool(jnp.all(jnp.isfinite(out_f32)))
    assert bool(jnp.all(jnp.abs(out_f32) <= 1.0))          # tanh output range
    assert bool(jnp.allclose(out_f32, ref, atol=1e-4, rtol=1e-4))

    # 2) Fast path (default): bf16 matmul inputs, f32 accumulation, bf16 output.
    params_bf16 = prepare_patch_generator_params(w1, b1, w2, b2, patch_size,
                                                 matmul_dtype=jnp.bfloat16)
    out_bf16 = patch_classical_generator_forward(noise, *params_bf16,
                                                 patch_size=patch_size,
                                                 out_dtype=jnp.bfloat16)
    out_bf16 = jax.block_until_ready(out_bf16)
    assert out_bf16.dtype == jnp.bfloat16
    out_bf16_f32 = out_bf16.astype(jnp.float32)
    assert bool(jnp.all(jnp.isfinite(out_bf16_f32)))
    assert bool(jnp.allclose(out_bf16_f32, ref, atol=5e-2, rtol=5e-2))

    print("KERNEL_OK")
</pallas_src>

<mosaic_0001>
module attributes {stable_mosaic.version = 11 : i64} {
  func.func @_grouped_patch_gen_kernel(%arg0: i32, %arg1: i32, %arg2: memref<1x8x32xf32, #tpu.memory_space<vmem>>, %arg3: memref<1x32x256xf32, #tpu.memory_space<vmem>>, %arg4: memref<1x1x256xf32, #tpu.memory_space<vmem>>, %arg5: memref<1x256x128xf32, #tpu.memory_space<vmem>>, %arg6: memref<1x1x128xf32, #tpu.memory_space<vmem>>, %arg7: memref<8x128xf32, #tpu.memory_space<vmem>>) attributes {dimension_semantics = [#tpu.dimension_semantics<parallel>, #tpu.dimension_semantics<parallel>], iteration_bounds = array<i64: 2, 2>, scalar_prefetch = 0 : i64, scratch_operands = 0 : i64, tpu.core_type = #tpu.core_type<tc>, window_params = [{transform_indices = @transform_0, window_bounds = array<i64: 1, 8, 32>}, {transform_indices = @transform_1, window_bounds = array<i64: 1, 32, 256>}, {transform_indices = @transform_2, window_bounds = array<i64: 1, 1, 256>}, {transform_indices = @transform_3, window_bounds = array<i64: 1, 256, 128>}, {transform_indices = @transform_4, window_bounds = array<i64: 1, 1, 128>}, {transform_indices = @transform_5, window_bounds = array<i64: 8, 128>}]} {
    %c0 = arith.constant 0 : index
    %c0_0 = arith.constant 0 : index
    %c0_1 = arith.constant 0 : index
    %0 = vector.load %arg2[%c0, %c0_0, %c0_1] : memref<1x8x32xf32, #tpu.memory_space<vmem>>, vector<1x8x32xf32>
    %1 = vector.shape_cast %0 : vector<1x8x32xf32> to vector<8x32xf32>
    %c0_2 = arith.constant 0 : index
    %c0_3 = arith.constant 0 : index
    %c0_4 = arith.constant 0 : index
    %2 = vector.load %arg3[%c0_2, %c0_3, %c0_4] : memref<1x32x256xf32, #tpu.memory_space<vmem>>, vector<1x32x256xf32>
    %3 = vector.shape_cast %2 : vector<1x32x256xf32> to vector<32x256xf32>
    %cst = arith.constant dense<0.000000e+00> : vector<8x256xf32>
    %4 = tpu.matmul %1, %3, %cst {dimension_numbers = #tpu.dot_dimension_numbers<[1], [0], [0], [1], [0, 0, 1, 1], [], []>} : vector<8x32xf32>, vector<32x256xf32>, vector<8x256xf32> -> vector<8x256xf32>
    %c0_5 = arith.constant 0 : index
    %c0_6 = arith.constant 0 : index
    %c0_7 = arith.constant 0 : index
    %5 = vector.load %arg4[%c0_5, %c0_6, %c0_7] : memref<1x1x256xf32, #tpu.memory_space<vmem>>, vector<1x1x256xf32>
    %6 = vector.shape_cast %5 : vector<1x1x256xf32> to vector<1x256xf32>
    %7 = vector.broadcast %6 : vector<1x256xf32> to vector<8x256xf32>
    %8 = arith.addf %4, %7 : vector<8x256xf32>
    %cst_8 = arith.constant 0.000000e+00 : f32
    %9 = vector.broadcast %cst_8 : f32 to vector<8x256xf32>
    %10 = arith.maximumf %8, %9 : vector<8x256xf32>
    %c0_9 = arith.constant 0 : index
    %c0_10 = arith.constant 0 : index
    %c0_11 = arith.constant 0 : index
    %11 = vector.load %arg5[%c0_9, %c0_10, %c0_11] : memref<1x256x128xf32, #tpu.memory_space<vmem>>, vector<1x256x128xf32>
    %12 = vector.shape_cast %11 : vector<1x256x128xf32> to vector<256x128xf32>
    %cst_12 = arith.constant dense<0.000000e+00> : vector<8x128xf32>
    %13 = tpu.matmul %10, %12, %cst_12 {dimension_numbers = #tpu.dot_dimension_numbers<[1], [0], [0], [1], [0, 0, 1, 1], [], []>} : vector<8x256xf32>, vector<256x128xf32>, vector<8x128xf32> -> vector<8x128xf32>
    %c0_13 = arith.constant 0 : index
    %c0_14 = arith.constant 0 : index
    %c0_15 = arith.constant 0 : index
    %14 = vector.load %arg6[%c0_13, %c0_14, %c0_15] : memref<1x1x128xf32, #tpu.memory_space<vmem>>, vector<1x1x128xf32>
    %15 = vector.shape_cast %14 : vector<1x1x128xf32> to vector<1x128xf32>
    %16 = vector.broadcast %15 : vector<1x128xf32> to vector<8x128xf32>
    %17 = arith.addf %13, %16 : vector<8x128xf32>
    %18 = math.tanh %17 : vector<8x128xf32>
    %c0_16 = arith.constant 0 : index
    %c0_17 = arith.constant 0 : index
    %19 = vector.load %arg7[%c0_16, %c0_17] : memref<8x128xf32, #tpu.memory_space<vmem>>, vector<8x128xf32>
    tpu.vector_store %arg7[%c0_16, %c0_17], %18 {strides = array<i32>} : memref<8x128xf32, #tpu.memory_space<vmem>>, vector<8x128xf32>,
    return
  }
  func.func @transform_0(%arg0: i32, %arg1: i32) -> (i32, i32, i32) {
    %c0_i32 = arith.constant 0 : i32
    %c0_i32_0 = arith.constant 0 : i32
    return %arg0, %arg1, %c0_i32 : i32, i32, i32
  }
  func.func @transform_1(%arg0: i32, %arg1: i32) -> (i32, i32, i32) {
    %c0_i32 = arith.constant 0 : i32
    %c0_i32_0 = arith.constant 0 : i32
    %c0_i32_1 = arith.constant 0 : i32
    return %arg0, %c0_i32, %c0_i32_0 : i32, i32, i32
  }
  func.func @transform_2(%arg0: i32, %arg1: i32) -> (i32, i32, i32) {
    %c0_i32 = arith.constant 0 : i32
    %c0_i32_0 = arith.constant 0 : i32
    %c0_i32_1 = arith.constant 0 : i32
    return %arg0, %c0_i32, %c0_i32_0 : i32, i32, i32
  }
  func.func @transform_3(%arg0: i32, %arg1: i32) -> (i32, i32, i32) {
    %c0_i32 = arith.constant 0 : i32
    %c0_i32_0 = arith.constant 0 : i32
    %c0_i32_1 = arith.constant 0 : i32
    return %arg0, %c0_i32, %c0_i32_0 : i32, i32, i32
  }
  func.func @transform_4(%arg0: i32, %arg1: i32) -> (i32, i32, i32) {
    %c0_i32 = arith.constant 0 : i32
    %c0_i32_0 = arith.constant 0 : i32
    %c0_i32_1 = arith.constant 0 : i32
    return %arg0, %c0_i32, %c0_i32_0 : i32, i32, i32
  }
  func.func @transform_5(%arg0: i32, %arg1: i32) -> (i32, i32) {
    %c0_i32 = arith.constant 0 : i32
    return %arg1, %arg0 : i32, i32
  }
}

</mosaic_0001>

<llo_original>
// kernel: patch_classical_generator_forward.1
$region0: #{patch_classical_generator_forward.1}
  #allocation0 [shape = 'u32[]', space=smem, size = 0x4, offset = 0x4, fixed_abs, tag = 'smem constant byte address 0x4 - core index']
  #allocation1 [shape = 'u32[144,128]{1,0:T(1,128)}', space=vmem, size = 0x12000, scoped, tag = 'internal scratch']
  %s0 = inlined_call_operand.vmem [shape: f32[2,16,32], index: 0, kind: input, shape index: {}]
  %s1 = inlined_call_operand.vmem [shape: f32[2,32,256], index: 1, kind: input, shape index: {}]
  %s2 = inlined_call_operand.vmem [shape: f32[2,1,256], index: 2, kind: input, shape index: {}]
  %s3 = inlined_call_operand.hbm [shape: f32[2,256,128], index: 3, kind: input, shape index: {}]
  %s4 = inlined_call_operand.vmem [shape: f32[2,1,128], index: 4, kind: input, shape index: {}]
  %s5 = inlined_call_operand.vmem [shape: f32[16,256], index: 5, kind: output, shape index: {}]
  %s6 = sld [smem:[#allocation0]]
  $region57: #{patch_classical_generator_forward.1} parent=0
    _
  %s8 = ssub.s32 1, %s6
  %s9 = scalar_select 0, %s8, %s6
  $region1: #{patch_classical_generator_forward.1} parent=0
    #allocation2 [shape = 'u8[262144]{0}', space=vmem, size = 0x40000, scoped, tag = 'input window, operand 3']
    #allocation3 [shape = 's32[2]{0}', space=sflag, size = 0x8, scoped, tag = 'scoped memory for patch_classical_generator_forward.1']
    %10 = vsyncpa [#allocation3], 0
    %s11 = scalar_lea.sflag [#allocation3], 1
    %12 = vsyncpa %s11, 0
    loop: start=0, step=1, limit=6
    $region2: #{patch_classical_generator_forward.1} parent=1 // loop_pre_header
      _
    $region3: #{patch_classical_generator_forward.1} parent=1 // loop_header
      %s14 = sphi 0, %s18
      %p15 = scmp.ge.s32.totalorder %s14, 6
      %s21 = sphi 0, %s33
      %s22 = sphi 0, %s29
      %s23 = sphi 0, %s21
      %s24 = sphi 0, %s22
      %s25 = sphi 0, %s23
      %s26 = sphi 0, %s24
      %s38 = sphi 0, %s40
      %s41 = sphi 0, %s38
      %s42 = sphi 0, %s41
      %s58 = sphi 0, %s42
      %s64 = sphi 0, %s66
      %s67 = sphi 0, %s64
      %s68 = sphi 0, %s67
      %s84 = sphi 0, %s68
      %s90 = sphi 0, %s92
      %s93 = sphi 0, %s90
      %s94 = sphi 0, %s93
      %s110 = sphi 0, %s94
      %s116 = sphi 0, %s118
      %s119 = sphi 0, %s116
      %s120 = sphi 0, %s119
      %s136 = sphi 0, %s120
      %s142 = sphi 0, %s144
      %s145 = sphi 0, %s142
      %s146 = sphi 0, %s145
      %s162 = sphi 0, %s146
      %s170 = sphi 0, %s172
      %s173 = sphi 0, %s170
      %s174 = sphi 0, %s173
      %s190 = sphi 0, %s174
    $region4: #{patch_classical_generator_forward.1} parent=1 // loop_header_branch
      %17 = sbr.rel (%p15) target = $region8
    $region5: #{patch_classical_generator_forward.1} parent=1 // loop_body
      %s19 = ssub.s32 %s14, 1
      %s20 = ssub.s32 %s14, 2
      %s27 = sadd.s32 1, %s22
      %p28 = scmp.ge.s32.totalorder %s27, 2
      %s29 = scalar_select %p28, 0, %s27
      %s30 = sadd.s32 1, %s21
      %s31 = scalar_select %p28, %s30, %s21
      %p32 = scmp.ge.s32.totalorder %s31, 2
      %s33 = scalar_select %p32, 0, %s31
      %s34 = ssub.s32 %s21, %s33
      %s35 = ssub.s32 %s22, %s29
      %s36 = sor.u32 %s34, %s35
      %p37 = scmp.eq.s32.totalorder %s36, 0
      %s39 = sadd.s32 %s38, 1
      %s40 = scalar_select %p37, %s38, %s39
      %p43 = pneg %p37
      %p44 = scmp.eq.s32.totalorder %s14, 3
      %p45 = por %p43, %p44
      %p46 = scmp.ne.s32.totalorder %s38, %s41
      %p47 = scmp.eq.s32.totalorder %s14, 0
      %p48 = por %p46, %p47
      %p49 = scmp.ne.s32.totalorder %s38, %s41
      %p50 = scmp.eq.s32.totalorder %s19, 3
      %p51 = por %p49, %p50
      %p52 = scmp.ne.s32.totalorder %s41, %s42
      %p53 = scmp.eq.s32.totalorder %s19, 0
      %p54 = por %p52, %p53
      %p55 = scmp.ne.s32.totalorder %s41, %s42
      %p56 = scmp.eq.s32.totalorder %s20, 3
      %p57 = por %p55, %p56
      %p59 = scmp.ne.s32.totalorder %s42, %s58
      %p60 = scmp.eq.s32.totalorder %s20, 0
      %p61 = por %p59, %p60
      %s62 = ssub.s32 %s21, %s33
      %p63 = scmp.eq.s32.totalorder %s62, 0
      %s65 = sadd.s32 %s64, 1
      %s66 = scalar_select %p63, %s64, %s65
      %p69 = pneg %p63
      %p70 = scmp.eq.s32.totalorder %s14, 3
      %p71 = por %p69, %p70
      %p72 = scmp.ne.s32.totalorder %s64, %s67
      %p73 = scmp.eq.s32.totalorder %s14, 0
      %p74 = por %p72, %p73
      %p75 = scmp.ne.s32.totalorder %s64, %s67
      %p76 = scmp.eq.s32.totalorder %s19, 3
      %p77 = por %p75, %p76
      %p78 = scmp.ne.s32.totalorder %s67, %s68
      %p79 = scmp.eq.s32.totalorder %s19, 0
      %p80 = por %p78, %p79
      %p81 = scmp.ne.s32.totalorder %s67, %s68
      %p82 = scmp.eq.s32.totalorder %s20, 3
      %p83 = por %p81, %p82
      %p85 = scmp.ne.s32.totalorder %s68, %s84
      %p86 = scmp.eq.s32.totalorder %s20, 0
      %p87 = por %p85, %p86
      %s88 = ssub.s32 %s21, %s33
      %p89 = scmp.eq.s32.totalorder %s88, 0
      %s91 = sadd.s32 %s90, 1
      %s92 = scalar_select %p89, %s90, %s91
      %p95 = pneg %p89
      %p96 = scmp.eq.s32.totalorder %s14, 3
      %p97 = por %p95, %p96
      %p98 = scmp.ne.s32.totalorder %s90, %s93
      %p99 = scmp.eq.s32.totalorder %s14, 0
      %p100 = por %p98, %p99
      %p101 = scmp.ne.s32.totalorder %s90, %s93
      %p102 = scmp.eq.s32.totalorder %s19, 3
      %p103 = por %p101, %p102
      %p104 = scmp.ne.s32.totalorder %s93, %s94
      %p105 = scmp.eq.s32.totalorder %s19, 0
      %p106 = por %p104, %p105
      %p107 = scmp.ne.s32.totalorder %s93, %s94
      %p108 = scmp.eq.s32.totalorder %s20, 3
      %p109 = por %p107, %p108
      %p111 = scmp.ne.s32.totalorder %s94, %s110
      %p112 = scmp.eq.s32.totalorder %s20, 0
      %p113 = por %p111, %p112
      %s114 = ssub.s32 %s21, %s33
      %p115 = scmp.eq.s32.totalorder %s114, 0
      %s117 = sadd.s32 %s116, 1
      %s118 = scalar_select %p115, %s116, %s117
      %p121 = pneg %p115
      %p122 = scmp.eq.s32.totalorder %s14, 3
      %p123 = por %p121, %p122
      %p124 = scmp.ne.s32.totalorder %s116, %s119
      %p125 = scmp.eq.s32.totalorder %s14, 0
      %p126 = por %p124, %p125
      %p127 = scmp.ne.s32.totalorder %s116, %s119
      %p128 = scmp.eq.s32.totalorder %s19, 3
      %p129 = por %p127, %p128
      %p130 = scmp.ne.s32.totalorder %s119, %s120
      %p131 = scmp.eq.s32.totalorder %s19, 0
      %p132 = por %p130, %p131
      %p133 = scmp.ne.s32.totalorder %s119, %s120
      %p134 = scmp.eq.s32.totalorder %s20, 3
      %p135 = por %p133, %p134
      %p137 = scmp.ne.s32.totalorder %s120, %s136
      %p138 = scmp.eq.s32.totalorder %s20, 0
      %p139 = por %p137, %p138
      %s140 = ssub.s32 %s21, %s33
      %p141 = scmp.eq.s32.totalorder %s140, 0
      %s143 = sadd.s32 %s142, 1
      %s144 = scalar_select %p141, %s142, %s143
      %p147 = pneg %p141
      %p148 = scmp.eq.s32.totalorder %s14, 3
      %p149 = por %p147, %p148
      %p150 = scmp.ne.s32.totalorder %s142, %s145
      %p151 = scmp.eq.s32.totalorder %s14, 0
      %p152 = por %p150, %p151
      %p153 = scmp.ne.s32.totalorder %s142, %s145
      %p154 = scmp.eq.s32.totalorder %s19, 3
      %p155 = por %p153, %p154
      %p156 = scmp.ne.s32.totalorder %s145, %s146
      %p157 = scmp.eq.s32.totalorder %s19, 0
      %p158 = por %p156, %p157
      %p159 = scmp.ne.s32.totalorder %s145, %s146
      %p160 = scmp.eq.s32.totalorder %s20, 3
      %p161 = por %p159, %p160
      %p163 = scmp.ne.s32.totalorder %s146, %s162
      %p164 = scmp.eq.s32.totalorder %s20, 0
      %p165 = por %p163, %p164
      %s166 = ssub.s32 %s22, %s29
      %s167 = ssub.s32 %s21, %s33
      %s168 = sor.u32 %s166, %s167
      %p169 = scmp.eq.s32.totalorder %s168, 0
      %s171 = sadd.s32 %s170, 1
      %s172 = scalar_select %p169, %s170, %s171
      %p175 = pneg %p169
      %p176 = scmp.eq.s32.totalorder %s14, 3
      %p177 = por %p175, %p176
      %p178 = scmp.ne.s32.totalorder %s170, %s173
      %p179 = scmp.eq.s32.totalorder %s14, 0
      %p180 = por %p178, %p179
      %p181 = scmp.ne.s32.totalorder %s170, %s173
      %p182 = scmp.eq.s32.totalorder %s19, 3
      %p183 = por %p181, %p182
      %p184 = scmp.ne.s32.totalorder %s173, %s174
      %p185 = scmp.eq.s32.totalorder %s19, 0
      %p186 = por %p184, %p185
      %p187 = scmp.ne.s32.totalorder %s173, %s174
      %p188 = scmp.eq.s32.totalorder %s20, 3
      %p189 = por %p187, %p188
      %p191 = scmp.ne.s32.totalorder %s174, %s190
      %p192 = scmp.eq.s32.totalorder %s20, 0
      %p193 = por %p191, %p192
      %p194 = scmp.le.s32.totalorder 1, %s14
      %p195 = scmp.lt.s32.totalorder %s14, 5
      %p196 = pnand %p194, %p195
      %p197 = pneg %p196
      // Predicated region
      $region9: #{patch_classical_generator_forward.1} parent=5 // pred_check
        _
      $region10: #{patch_classical_generator_forward.1} parent=5 // pred_check_branch
        %199 = sbr.rel (%p196) target = $region12
      $region11: #{patch_classical_generator_forward.1} parent=5 // pred_region
        %s200 = ssub.s32 %s14, 1
      $region12: #{patch_classical_generator_forward.1} parent=5 // pred_fallthru
        _
      %p201 = scmp.lt.s32.totalorder %s14, 4
      // Predicated region
      $region13: #{patch_classical_generator_forward.1} parent=5 // pred_check
        %p202 = pneg %p201
      $region14: #{patch_classical_generator_forward.1} parent=5 // pred_check_branch
        %204 = sbr.rel (%p202) target = $region16
      $region15: #{patch_classical_generator_forward.1} parent=5 // pred_region
        // Predicated region
        $region17: #{patch_classical_generator_forward.1} parent=15 // pred_check
          %p205 = pneg %p48
        $region18: #{patch_classical_generator_forward.1} parent=15 // pred_check_branch
          %207 = sbr.rel (%p205) target = $region20
        $region19: #{patch_classical_generator_forward.1} parent=15 // pred_region
          %p208 = scmp.lt.s32.totalorder %s21, 1
          %s209 = scalar_select %p208, %s21, 1
          %p210 = scmp.lt.s32.totalorder %s22, 1
          %s211 = scalar_select %p210, %s22, 1
          %s212 = smul.addr %s209, 2
          %s213 = sadd.s32 %s211, %s212
          %s214 = smul.addr %s213, 8
          %s215 = scalar_lea.vmem %s0, %s214
        $region20: #{patch_classical_generator_forward.1} parent=15 // pred_fallthru
          _
        // Predicated region
        $region21: #{patch_classical_generator_forward.1} parent=15 // pred_check
          %p216 = pneg %p74
        $region22: #{patch_classical_generator_forward.1} parent=15 // pred_check_branch
          %218 = sbr.rel (%p216) target = $region24
        $region23: #{patch_classical_generator_forward.1} parent=15 // pred_region
          %p219 = scmp.lt.s32.totalorder %s21, 1
          %s220 = scalar_select %p219, %s21, 1
          %s221 = smul.addr %s220, 8
          %s222 = smul.addr %s221, 8
          %s223 = scalar_lea.vmem %s1, %s222
        $region24: #{patch_classical_generator_forward.1} parent=15 // pred_fallthru
          _
        // Predicated region
        $region25: #{patch_classical_generator_forward.1} parent=15 // pred_check
          %p224 = pneg %p100
        $region26: #{patch_classical_generator_forward.1} parent=15 // pred_check_branch
          %226 = sbr.rel (%p224) target = $region28
        $region27: #{patch_classical_generator_forward.1} parent=15 // pred_region
          %p227 = scmp.lt.s32.totalorder %s21, 1
          %s228 = scalar_select %p227, %s21, 1
          %s229 = smul.addr %s228, 2
          %s230 = scalar_lea.vmem %s2, %s229
        $region28: #{patch_classical_generator_forward.1} parent=15 // pred_fallthru
          _
        // Predicated region
        $region29: #{patch_classical_generator_forward.1} parent=15 // pred_check
          %p231 = pneg %p126
        $region30: #{patch_classical_generator_forward.1} parent=15 // pred_check_branch
          %233 = sbr.rel (%p231) target = $region32
        $region31: #{patch_classical_generator_forward.1} parent=15 // pred_region
          %s234 = sand.u32 %s116, 1
          %s235 = scalar_lea.sflag [#allocation3], %s234
          %s236 = sand.u32 %s116, 1
          %s237 = smul.addr %s236, 256
          %s238 = scalar_lea.vmem [#allocation2], %s237
          %s240 = ssub.s32 4096, 4096
          %241 = vsyncadd %s235, %s240
          %s242 = smul.addr %s21, 32
          %s243 = smul.addr %s242, 128
          %s244 = scalar_lea.hbm %s3, %s243
          %s245 = sshll.u32 %s238, 4
          %s246 = int_to_ptr.vmem [resolvable:$true] %s245
          %251 = dma.hbm_to_vmem [thread:$0]  %s244, 4096, %s246, %s235, 128, 128, 8
        $region32: #{patch_classical_generator_forward.1} parent=15 // pred_fallthru
          _
        // Predicated region
        $region33: #{patch_classical_generator_forward.1} parent=15 // pred_check
          %p252 = pneg %p152
        $region34: #{patch_classical_generator_forward.1} parent=15 // pred_check_branch
          %254 = sbr.rel (%p252) target = $region36
        $region35: #{patch_classical_generator_forward.1} parent=15 // pred_region
          %p255 = scmp.lt.s32.totalorder %s21, 1
          %s256 = scalar_select %p255, %s21, 1
          %s257 = scalar_lea.vmem %s4, %s256
        $region36: #{patch_classical_generator_forward.1} parent=15 // pred_fallthru
          _
      $region16: #{patch_classical_generator_forward.1} parent=5 // pred_fallthru
        _
      %p258 = scmp.le.s32.totalorder 1, %s14
      %p259 = scmp.lt.s32.totalorder %s14, 5
      %p260 = pnand %p258, %p259
      %p261 = pneg %p260
      // Predicated region
      $region37: #{patch_classical_generator_forward.1} parent=5 // pred_check
        _
      $region38: #{patch_classical_generator_forward.1} parent=5 // pred_check_branch
        %263 = sbr.rel (%p260) target = $region40
      $region39: #{patch_classical_generator_forward.1} parent=5 // pred_region
        %s264 = ssub.s32 %s14, 1
        %s265 = sand.u32 %s119, 1
        %s266 = scalar_lea.sflag [#allocation3], %s265
        %s267 = sand.u32 %s119, 1
        %s268 = smul.addr %s267, 256
        %s269 = scalar_lea.vmem [#allocation2], %s268
        // Predicated region
        $region41: #{patch_classical_generator_forward.1} parent=39 // pred_check
          %p270 = pneg %p132
        $region42: #{patch_classical_generator_forward.1} parent=39 // pred_check_branch
          %272 = sbr.rel (%p270) target = $region44
        $region43: #{patch_classical_generator_forward.1} parent=39 // pred_region
          %273 = dma.done %s266, 4096
        $region44: #{patch_classical_generator_forward.1} parent=39 // pred_fallthru
          _
        %p274 = scmp.lt.s32.totalorder %s23, 1
        %s275 = scalar_select %p274, %s23, 1
        %p276 = scmp.lt.s32.totalorder %s24, 1
        %s277 = scalar_select %p276, %s24, 1
        %s278 = smul.addr %s275, 2
        %s279 = sadd.s32 %s277, %s278
        %s280 = smul.addr %s279, 8
        %s281 = scalar_lea.vmem %s0, %s280
        %p282 = pneg %p54
        %p283 = pneg %p51
        %p284 = scmp.lt.s32.totalorder %s23, 1
        %s285 = scalar_select %p284, %s23, 1
        %s286 = smul.addr %s285, 8
        %s287 = smul.addr %s286, 8
        %s288 = scalar_lea.vmem %s1, %s287
        %p289 = pneg %p80
        %p290 = pneg %p77
        %p291 = scmp.lt.s32.totalorder %s23, 1
        %s292 = scalar_select %p291, %s23, 1
        %s293 = smul.addr %s292, 2
        %s294 = scalar_lea.vmem %s2, %s293
        %p295 = pneg %p106
        %p296 = pneg %p103
        %s297 = sand.u32 %s119, 1
        %s298 = scalar_lea.sflag [#allocation3], %s297
        %s299 = sand.u32 %s119, 1
        %s300 = smul.addr %s299, 256
        %s301 = scalar_lea.vmem [#allocation2], %s300
        %p302 = pneg %p132
        %p303 = pneg %p129
        %p304 = scmp.lt.s32.totalorder %s23, 1
        %s305 = scalar_select %p304, %s23, 1
        %s306 = scalar_lea.vmem %s4, %s305
        %p307 = pneg %p158
        %p308 = pneg %p155
        %p309 = pneg %p186
        %p310 = pneg %p183
        %p311 = scmp.lt.s32.totalorder %s24, 1
        %s312 = scalar_select %p311, %s24, 1
        %p313 = scmp.lt.s32.totalorder %s23, 1
        %s314 = scalar_select %p313, %s23, 1
        %s315 = smul.addr %s312, 2
        %s316 = sadd.s32 %s314, %s315
        %s317 = smul.addr %s316, 8
        %s318 = scalar_lea.vmem %s5, %s317
        %p319 = scmp.lt.s32.totalorder %s23, 1
        %s320 = scalar_select %p319, %s23, 1
        %p321 = scmp.lt.s32.totalorder %s24, 1
        %s322 = scalar_select %p321, %s24, 1
        %s323 = smul.addr %s320, 2
        %s324 = sadd.s32 %s322, %s323
        %s325 = smul.addr %s324, 8
        %s326 = scalar_lea.vmem %s0, %s325
        %p327 = scmp.lt.s32.totalorder %s23, 1
        %s328 = scalar_select %p327, %s23, 1
        %s329 = smul.addr %s328, 8
        %s330 = smul.addr %s329, 8
        %s331 = scalar_lea.vmem %s1, %s330
        %p332 = scmp.lt.s32.totalorder %s23, 1
        %s333 = scalar_select %p332, %s23, 1
        %s334 = smul.addr %s333, 2
        %s335 = scalar_lea.vmem %s2, %s334
        %p336 = scmp.lt.s32.totalorder %s23, 1
        %s337 = scalar_select %p336, %s23, 1
        %s338 = scalar_lea.vmem %s4, %s337
        %p339 = scmp.lt.s32.totalorder %s24, 1
        %s340 = scalar_select %p339, %s24, 1
        %p341 = scmp.lt.s32.totalorder %s23, 1
        %s342 = scalar_select %p341, %s23, 1
        %s343 = smul.addr %s340, 2
        %s344 = sadd.s32 %s342, %s343
        %s345 = smul.addr %s344, 8
        %s346 = scalar_lea.vmem %s5, %s345
        %v347 = vld [vmem:[%s326] sm:$0xff]
        %v348 = vld [vmem:[%s331] sm:$0xff]
        %v349 = vld [vmem:[%s331 + $0x8] sm:$0xff]
        %v350 = vld [vmem:[%s331 + $0x10] sm:$0xff]
        %v351 = vld [vmem:[%s331 + $0x18] sm:$0xff]
        %v352 = vld [vmem:[%s331 + $0x20] sm:$0xff]
        %v353 = vld [vmem:[%s331 + $0x28] sm:$0xff]
        %v354 = vld [vmem:[%s331 + $0x30] sm:$0xff]
        %v355 = vld [vmem:[%s331 + $0x38] sm:$0xff]
        %v356 = vld [vmem:[%s335] sm:$0x3]
        %v358 = vlaneseq
        %v359 = vshrl.u32 %v358, 7
        %v360 = vsub.s32 0, %v359
        %v361 = vrot.slane %v356, %v360
        %v362 = vlaneseq
        %v363 = vshrl.u32 %v362, 7
        %v364 = vsub.s32 1, %v363
        %v365 = vrot.slane %v356, %v364
        %vm368 = vcmask 261120
        %v370 = vsel %vm368, %v347, 0
        %372 = vmatprep.subr.mxu0 0.0
        %373 = vmatpush1.msra.mxu0 0.0
        %374 = vmatprep.subr.mxu0 0.0
        %375 = vmatpush1.msra.mxu0 0.0
        %376 = vmatprep.subr.mxu0 0.0
        %377 = vmatpush1.msra.mxu0 0.0
        %378 = vmatprep.subr.mxu0 0.0
        %379 = vmatpush1.msra.mxu0 0.0
        %380 = vmatprep.subr.mxu0 0.0
        %381 = vmatpush1.msra.mxu0 0.0
        %382 = vmatprep.subr.mxu0 0.0
        %383 = vmatpush1.msra.mxu0 0.0
        %384 = vmatprep.subr.mxu0 0.0
        %385 = vmatpush1.msra.mxu0 0.0
        %386 = vmatprep.subr.mxu0 0.0
        %387 = vmatpush1.msra.mxu0 0.0
        %388 = vmatprep.subr.mxu0 0.0
        %389 = vmatpush1.msra.mxu0 0.0
        %390 = vmatprep.subr.mxu0 0.0
        %391 = vmatpush1.msra.mxu0 0.0
        %392 = vmatprep.subr.mxu0 0.0
        %393 = vmatpush1.msra.mxu0 0.0
        %394 = vmatprep.subr.mxu0 0.0
        %395 = vmatpush1.msra.mxu0 0.0
        %396 = vmatprep.subr.mxu0 %v355
        %397 = vmatpush1.msra.mxu0 %v354
        %398 = vmatprep.subr.mxu0 %v353
        %399 = vmatpush1.msra.mxu0 %v352
        %400 = vmatprep.subr.mxu0 %v351
        %401 = vmatpush1.msra.mxu0 %v350
        %402 = vmatprep.subr.mxu0 %v349
        %403 = vmatpush1.msra.mxu0 %v348
        %404 = vmatprep.subr.mxu0 0.0
        %405 = vmatpush2.msra.mxu0 0.0
        %406 = vmatprep.subr.mxu0 0.0
        %407 = vmatpush2.msra.mxu0 0.0
        %408 = vmatprep.subr.mxu0 0.0
        %409 = vmatpush2.msra.mxu0 0.0
        %410 = vmatprep.subr.mxu0 0.0
        %411 = vmatpush2.msra.mxu0 0.0
        %412 = vmatprep.subr.mxu0 0.0
        %413 = vmatpush2.msra.mxu0 0.0
        %414 = vmatprep.subr.mxu0 0.0
        %415 = vmatpush2.msra.mxu0 0.0
        %416 = vmatprep.subr.mxu0 0.0
        %417 = vmatpush2.msra.mxu0 0.0
        %418 = vmatprep.subr.mxu0 0.0
        %419 = vmatpush2.msra.mxu0 0.0
        %420 = vmatprep.subr.mxu0 0.0
        %421 = vmatpush2.msra.mxu0 0.0
        %422 = vmatprep.subr.mxu0 0.0
        %423 = vmatpush2.msra.mxu0 0.0
        %424 = vmatprep.subr.mxu0 0.0
        %425 = vmatpush2.msra.mxu0 0.0
        %426 = vmatprep.subr.mxu0 0.0
        %427 = vmatpush2.msra.mxu0 0.0
        %428 = vmatprep.subr.mxu0 0.0
        %429 = vmatpush2.msra.mxu0 0.0
        %430 = vmatprep.subr.mxu0 0.0
        %431 = vmatpush2.msra.mxu0 0.0
        %432 = vmatprep.subr.mxu0 0.0
        %433 = vmatpush2.msra.mxu0 0.0
        %434 = vmatprep.subr.mxu0 0.0
        %435 = vmatpush2.msra.mxu0 0.0
        %436 = vmatprep.mubr.f32.mxu0 0.0
        %437 = vmatmul.mubr.f32.gmra.mxu0 %v370
        %v438 = vpop.f32.mrf.mxu0
        %v439 = vadd.f32 %v361, %v438
        %v440 = vpop.f32.mrf.mxu0
        %v441 = vadd.f32 %v365, %v440
        %442 = vdwg.mxu0
        %v443 = vmax.f32 %v439, 0.0
        %v444 = vmax.f32 %v441, 0.0
        %v445 = vld [vmem:[%s269] sm:$0xff]
        %v446 = vld [vmem:[%s269 + $0x8] sm:$0xff]
        %v447 = vld [vmem:[%s269 + $0x10] sm:$0xff]
        %v448 = vld [vmem:[%s269 + $0x18] sm:$0xff]
        %v449 = vld [vmem:[%s269 + $0x20] sm:$0xff]
        %v450 = vld [vmem:[%s269 + $0x28] sm:$0xff]
        %v451 = vld [vmem:[%s269 + $0x30] sm:$0xff]
        %v452 = vld [vmem:[%s269 + $0x38] sm:$0xff]
        %v453 = vld [vmem:[%s269 + $0x40] sm:$0xff]
        %v454 = vld [vmem:[%s269 + $0x48] sm:$0xff]
        %v455 = vld [vmem:[%s269 + $0x50] sm:$0xff]
        %v456 = vld [vmem:[%s269 + $0x58] sm:$0xff]
        %v457 = vld [vmem:[%s269 + $0x60] sm:$0xff]
        %v458 = vld [vmem:[%s269 + $0x68] sm:$0xff]
        %v459 = vld [vmem:[%s269 + $0x70] sm:$0xff]
        %v460 = vld [vmem:[%s269 + $0x78] sm:$0xff]
        %v461 = vld [vmem:[%s269 + $0x80] sm:$0xff]
        %v462 = vld [vmem:[%s269 + $0x88] sm:$0xff]
        %v463 = vld [vmem:[%s269 + $0x90] sm:$0xff]
        %v464 = vld [vmem:[%s269 + $0x98] sm:$0xff]
        %v465 = vld [vmem:[%s269 + $0xa0] sm:$0xff]
        %v466 = vld [vmem:[%s269 + $0xa8] sm:$0xff]
        %v467 = vld [vmem:[%s269 + $0xb0] sm:$0xff]
        %v468 = vld [vmem:[%s269 + $0xb8] sm:$0xff]
        %v469 = vld [vmem:[%s269 + $0xc0] sm:$0xff]
        %v470 = vld [vmem:[%s269 + $0xc8] sm:$0xff]
        %v471 = vld [vmem:[%s269 + $0xd0] sm:$0xff]
        %v472 = vld [vmem:[%s269 + $0xd8] sm:$0xff]
        %v473 = vld [vmem:[%s269 + $0xe0] sm:$0xff]
        %v474 = vld [vmem:[%s269 + $0xe8] sm:$0xff]
        %v475 = vld [vmem:[%s269 + $0xf0] sm:$0xff]
        %v476 = vld [vmem:[%s269 + $0xf8] sm:$0xff]
        %v477 = vld [vmem:[%s338] sm:$0x1]
        %v479 = vlaneseq
        %v480 = vshrl.u32 %v479, 7
        %v481 = vsub.s32 0, %v480
        %v482 = vrot.slane %v477, %v481
        %484 = vmatprep.subr.mxu0 0.0
        %485 = vmatpush1.msra.mxu0 %v460
        %486 = vmatprep.subr.mxu0 0.0
        %487 = vmatpush1.msra.mxu0 %v459
        %488 = vmatprep.subr.mxu0 0.0
        %489 = vmatpush1.msra.mxu0 %v458
        %490 = vmatprep.subr.mxu0 0.0
        %491 = vmatpush1.msra.mxu0 %v457
        %492 = vmatprep.subr.mxu0 0.0
        %493 = vmatpush1.msra.mxu0 %v456
        %494 = vmatprep.subr.mxu0 0.0
        %495 = vmatpush1.msra.mxu0 %v455
        %496 = vmatprep.subr.mxu0 0.0
        %497 = vmatpush1.msra.mxu0 %v454
        %498 = vmatprep.subr.mxu0 0.0
        %499 = vmatpush1.msra.mxu0 %v453
        %500 = vmatprep.subr.mxu0 0.0
        %501 = vmatpush1.msra.mxu0 %v452
        %502 = vmatprep.subr.mxu0 0.0
        %503 = vmatpush1.msra.mxu0 %v451
        %504 = vmatprep.subr.mxu0 0.0
        %505 = vmatpush1.msra.mxu0 %v450
        %506 = vmatprep.subr.mxu0 0.0
        %507 = vmatpush1.msra.mxu0 %v449
        %508 = vmatprep.subr.mxu0 0.0
        %509 = vmatpush1.msra.mxu0 %v448
        %510 = vmatprep.subr.mxu0 0.0
        %511 = vmatpush1.msra.mxu0 %v447
        %512 = vmatprep.subr.mxu0 0.0
        %513 = vmatpush1.msra.mxu0 %v446
        %514 = vmatprep.subr.mxu0 0.0
        %515 = vmatpush1.msra.mxu0 %v445
        %516 = vmatprep.subr.mxu0 0.0
        %517 = vmatpush2.msra.mxu0 %v476
        %518 = vmatprep.subr.mxu0 0.0
        %519 = vmatpush2.msra.mxu0 %v475
        %520 = vmatprep.subr.mxu0 0.0
        %521 = vmatpush2.msra.mxu0 %v474
        %522 = vmatprep.subr.mxu0 0.0
        %523 = vmatpush2.msra.mxu0 %v473
        %524 = vmatprep.subr.mxu0 0.0
        %525 = vmatpush2.msra.mxu0 %v472
        %526 = vmatprep.subr.mxu0 0.0
        %527 = vmatpush2.msra.mxu0 %v471
        %528 = vmatprep.subr.mxu0 0.0
        %529 = vmatpush2.msra.mxu0 %v470
        %530 = vmatprep.subr.mxu0 0.0
        %531 = vmatpush2.msra.mxu0 %v469
        %532 = vmatprep.subr.mxu0 0.0
        %533 = vmatpush2.msra.mxu0 %v468
        %534 = vmatprep.subr.mxu0 0.0
        %535 = vmatpush2.msra.mxu0 %v467
        %536 = vmatprep.subr.mxu0 0.0
        %537 = vmatpush2.msra.mxu0 %v466
        %538 = vmatprep.subr.mxu0 0.0
        %539 = vmatpush2.msra.mxu0 %v465
        %540 = vmatprep.subr.mxu0 0.0
        %541 = vmatpush2.msra.mxu0 %v464
        %542 = vmatprep.subr.mxu0 0.0
        %543 = vmatpush2.msra.mxu0 %v463
        %544 = vmatprep.subr.mxu0 0.0
        %545 = vmatpush2.msra.mxu0 %v462
        %546 = vmatprep.subr.mxu0 0.0
        %547 = vmatpush2.msra.mxu0 %v461
        %548 = vmatprep.mubr.f32.mxu0 %v444
        %549 = vmatmul.mubr.f32.gmra.mxu0 %v443
        %v550 = vpop.f32.mrf.mxu0
        %v551 = vadd.f32 %v482, %v550
        %v552 = vpop.f32.mrf.mxu0
        %553 = vdwg.mxu0
        %v554 = vtanh.pop %v551
        %555 = vst [vmem:[%s346] sm:$0xff] %v554
        %p556 = scmp.lt.s32.totalorder %s24, 1
        %s557 = scalar_select %p556, %s24, 1
        %p558 = scmp.lt.s32.totalorder %s23, 1
        %s559 = scalar_select %p558, %s23, 1
        %s560 = smul.addr %s557, 2
        %s561 = sadd.s32 %s559, %s560
        %s562 = smul.addr %s561, 8
        %s563 = scalar_lea.vmem %s5, %s562
        // Predicated region
        $region45: #{patch_classical_generator_forward.1} parent=39 // pred_check
          %p564 = pneg %p183
        $region46: #{patch_classical_generator_forward.1} parent=39 // pred_check_branch
          %566 = sbr.rel (%p564) target = $region48
        $region47: #{patch_classical_generator_forward.1} parent=39 // pred_region
          _
        $region48: #{patch_classical_generator_forward.1} parent=39 // pred_fallthru
          _
      $region40: #{patch_classical_generator_forward.1} parent=5 // pred_fallthru
        _
      %p567 = scmp.le.s32.totalorder 2, %s14
      // Predicated region
      $region49: #{patch_classical_generator_forward.1} parent=5 // pred_check
        %p568 = pneg %p567
      $region50: #{patch_classical_generator_forward.1} parent=5 // pred_check_branch
        %570 = sbr.rel (%p568) target = $region52
      $region51: #{patch_classical_generator_forward.1} parent=5 // pred_region
        %s571 = ssub.s32 %s14, 2
        // Predicated region
        $region53: #{patch_classical_generator_forward.1} parent=51 // pred_check
          %p572 = pneg %p189
        $region54: #{patch_classical_generator_forward.1} parent=51 // pred_check_branch
          %574 = sbr.rel (%p572) target = $region56
        $region55: #{patch_classical_generator_forward.1} parent=51 // pred_region
          %p575 = scmp.lt.s32.totalorder %s26, 1
          %s576 = scalar_select %p575, %s26, 1
          %p577 = scmp.lt.s32.totalorder %s25, 1
          %s578 = scalar_select %p577, %s25, 1
          %s579 = smul.addr %s576, 2
          %s580 = sadd.s32 %s578, %s579
          %s581 = smul.addr %s580, 8
          %s582 = scalar_lea.vmem %s5, %s581
        $region56: #{patch_classical_generator_forward.1} parent=51 // pred_fallthru
          _
      $region52: #{patch_classical_generator_forward.1} parent=5 // pred_fallthru
        _
    $region6: #{patch_classical_generator_forward.1} parent=1 // loop_footer
      %s18 = sadd.s32 1, %s14
    $region7: #{patch_classical_generator_forward.1} parent=1 // loop_footer_branch
      %13 = sbr.rel target = $region3
    $region8: #{patch_classical_generator_forward.1} parent=1 // loop_exit
      _
    %583 = vsyncpa [#allocation3], 1
    %s584 = scalar_lea.sflag [#allocation3], 1
    %585 = vsyncpa %s584, 1

</llo_original>
